<compile_context>
chip_gen: v5e
topology: v5e:2x2
jax: 0.10.0
libtpu: 0.0.40
codegen_flags: <defaults>
</compile_context>

<pallas_src>
import math
import functools

import numpy as np
import jax
import jax.numpy as jnp
from jax import lax
from jax.experimental import pallas as pl
from jax.experimental.pallas import tpu as pltpu


def _get_padding(ksize, stride, dilation):
    return math.ceil((1 - stride + dilation * (ksize - 1)) / 2)


def _spectral_normalize(w):
    sigma = jnp.linalg.norm(w.reshape(w.shape[0], -1), ord=2)
    return w / sigma


def _round_up(x, m):
    return ((x + m - 1) // m) * m


def _gated_deconv_kernel(x_ref, w_ref, b_ref, o_ref, col_ref, *,
                         tap_offsets, cin, n_cols, p_cout):
    """One batch tile per grid step.

    x_ref   : (Cin, bt*Lp_pad + tail)  f32  flat zero-padded images, lane-stacked
    w_ref   : (2*P*Cout, KE*KE*Cin)    f32  phase-folded fused (feat ++ mask) weights
    b_ref   : (2*P*Cout, 1)            f32  fused biases (per phase)
    o_ref   : (P*Cout, bt*Lp_pad)      f32  phase-stacked gated output, lane dense
    col_ref : (KE*KE*Cin, bt*Lp_pad)   f32  scratch: im2col at ORIGINAL resolution
    """
    # 1) im2col: every tap is one contiguous lane slice covering the whole batch
    #    tile (row-major "padded width" flat space at original resolution).
    for t, off in enumerate(tap_offsets):            # static unroll over KE*KE taps
        col_ref[t * cin:(t + 1) * cin, :] = x_ref[:, off:off + n_cols]
    # 2) single fused matmul: all s*s phases of feature-conv ++ mask-conv at once.
    acc = jnp.dot(w_ref[...], col_ref[...],
                  preferred_element_type=jnp.float32) + b_ref[...]
    feat = acc[:p_cout, :]
    mask = acc[p_cout:, :]
    # 3) f32 epilogue: ELU(alpha=1) gated by exact sigmoid(mask).
    feat = jnp.where(feat > 0, feat, jnp.exp(jnp.minimum(feat, 0.0)) - 1.0)
    gate = 1.0 / (1.0 + jnp.exp(-mask))
    o_ref[...] = (feat * gate).astype(o_ref.dtype)


def gated_deconv2d_forward(x_nchw, params, *, scale, kernel_size, stride=1,
                           padding=None, dilation=1, batch_tile=8):
    """Forward pass of GatedDeConv2d (PyTorch semantics, NCHW in/out)."""
    assert stride == 1, "only stride=1 (module default) implemented"
    assert int(scale) == scale and scale >= 1, "integer nearest-upsample scale only"
    s = int(scale)
    K = int(kernel_size)
    d = int(dilation)
    if padding is None:
        padding = _get_padding(K, stride, d)

    N, Cin, H, W = x_nchw.shape
    w = _spectral_normalize(params["w"]).astype(jnp.float32)       # (Cout, Cin, K, K)
    wm = _spectral_normalize(params["w_mask"]).astype(jnp.float32)
    Cout = w.shape[0]
    assert w.shape[1] == Cin, "groups > 1 not implemented"

    Hout = s * H + 2 * padding - d * (K - 1)
    Wout = s * W + 2 * padding - d * (K - 1)
    assert Hout == s * H and Wout == s * W, \
        "phase-folded kernel requires 'same'-size conv (module-default padding)"

    # ---- phase decomposition of (nearest-upsample -> conv) into KE x KE conv ----
    # output row i = s*ib + ph reads original row ib + floor((ph + kh*d - pad)/s)
    offs = [[(ph + kh * d - padding) // s for kh in range(K)] for ph in range(s)]
    off_min = min(min(o) for o in offs)
    off_max = max(max(o) for o in offs)
    KE = off_max - off_min + 1                 # unified effective window (3 for s=2,K=3)
    padT, padB = -off_min, off_max             # zero-pad of the ORIGINAL image

    A = np.zeros((s, KE, K), np.float32)       # phase fold matrix: tap kh -> window row r
    for ph in range(s):
        for kh in range(K):
            A[ph, offs[ph][kh] - off_min, kh] = 1.0
    A = jnp.asarray(A)

    P = s * s
    R = KE * KE * Cin

    def fold(wt):                              # (Cout,Cin,K,K) -> (P*Cout, KE*KE*Cin)
        we = jnp.einsum('hrk,wql,ockl->hworqc', A, A, wt)
        return we.reshape(P * Cout, R)

    w_big = jnp.concatenate([fold(w), fold(wm)], axis=0)            # (2*P*Cout, R)
    b_big = jnp.concatenate([jnp.tile(params["b"].astype(jnp.float32), P),
                             jnp.tile(params["b_mask"].astype(jnp.float32), P)])
    b_big = b_big.reshape(2 * P * Cout, 1)

    # ---- flat padded-width layout at ORIGINAL resolution, batch on the lane axis ----
    Wpp = W + padT + padB
    Hp = H + padT + padB
    Lp = Hp * Wpp
    Lp_pad = _round_up(Lp, 128)                # per-image lane stride: lane-dense output
    bt = max(1, min(batch_tile, N))
    G = -(-N // bt)
    N_pad = G * bt

    xp = jnp.pad(x_nchw.astype(jnp.float32),
                 ((0, N_pad - N), (0, 0), (padT, padB), (padT, padB)))
    xp = xp.reshape(N_pad, Cin, Lp)
    xp = jnp.pad(xp, ((0, 0), (0, 0), (0, Lp_pad - Lp)))
    # stack bt images along the lane axis of each grid step
    xp = xp.reshape(G, bt, Cin, Lp_pad).transpose(0, 2, 1, 3).reshape(G, Cin, bt * Lp_pad)
    # tail of zeros so every tap's flat slice stays in range (keeps width 128-aligned)
    s_max_tap = (KE - 1) * Wpp + (KE - 1)
    tail = _round_up(s_max_tap, 128)
    xp = jnp.pad(xp, ((0, 0), (0, 0), (0, tail)))         # (G, Cin, bt*Lp_pad + tail)

    n_cols = bt * Lp_pad                                   # multiple of 128
    taps = tuple(r * Wpp + q for r in range(KE) for q in range(KE))

    kernel = functools.partial(_gated_deconv_kernel, tap_offsets=taps, cin=Cin,
                               n_cols=n_cols, p_cout=P * Cout)

    out_flat = pl.pallas_call(
        kernel,
        out_shape=jax.ShapeDtypeStruct((G, P * Cout, n_cols), jnp.float32),
        grid=(G,),
        in_specs=[
            pl.BlockSpec((None, Cin, n_cols + tail), lambda g: (g, 0, 0)),
            pl.BlockSpec((2 * P * Cout, R), lambda g: (0, 0)),
            pl.BlockSpec((2 * P * Cout, 1), lambda g: (0, 0)),
        ],
        out_specs=pl.BlockSpec((None, P * Cout, n_cols), lambda g: (g, 0, 0)),
        scratch_shapes=[pltpu.VMEM((R, n_cols), jnp.float32)],
        compiler_params=pltpu.CompilerParams(
            dimension_semantics=("parallel",),
            vmem_limit_bytes=32 * 1024 * 1024),
    )(xp, w_big, b_big)

    # ---- de-interleave phases back to NCHW (cheap XLA transpose of the output) ----
    out = out_flat.reshape(G, s, s, Cout, bt, Lp_pad)
    out = out[..., :H * Wpp].reshape(G, s, s, Cout, bt, H, Wpp)[..., :W]
    out = out.transpose(0, 4, 3, 5, 1, 6, 2)               # (G, bt, Cout, H, ph, W, pw)
    out = out.reshape(N_pad, Cout, s * H, s * W)
    return out[:N]


def _reference_forward(x_nchw, params, *, scale, kernel_size, stride=1,
                       padding=None, dilation=1):
    """Pure-JAX f32 reference mirroring the PyTorch module."""
    if padding is None:
        padding = _get_padding(kernel_size, stride, dilation)
    x_up = jnp.repeat(jnp.repeat(x_nchw, scale, axis=2), scale, axis=3)
    w = _spectral_normalize(params["w"])
    wm = _spectral_normalize(params["w_mask"])
    dn = ("NCHW", "OIHW", "NCHW")
    conv = lax.conv_general_dilated(
        x_up, w, (stride, stride), [(padding, padding)] * 2,
        rhs_dilation=(dilation, dilation), dimension_numbers=dn,
        precision=lax.Precision.HIGHEST)
    conv = conv + params["b"][None, :, None, None]
    mask = lax.conv_general_dilated(
        x_up, wm, (stride, stride), [(padding, padding)] * 2,
        rhs_dilation=(dilation, dilation), dimension_numbers=dn,
        precision=lax.Precision.HIGHEST)
    mask = mask + params["b_mask"][None, :, None, None]
    return jax.nn.elu(conv) * jax.nn.sigmoid(mask)


if __name__ == "__main__":
    # Module config: GatedDeConv2d(scale=2, in_channels=4, out_channels=4, kernel_size=3)
    scale, in_ch, out_ch, ksize = 2, 4, 4, 3
    N, H, W = 2, 16, 16

    key = jax.random.PRNGKey(0)
    k_x, k_w, k_b, k_wm, k_bm = jax.random.split(key, 5)
    x = jax.random.normal(k_x, (N, in_ch, H, W), dtype=jnp.float32)

    fan_in = in_ch * ksize * ksize
    std = 1.0 / math.sqrt(fan_in)
    params = {
        "w":      std * jax.random.normal(k_w,  (out_ch, in_ch, ksize, ksize), jnp.float32),
        "b":      std * jax.random.normal(k_b,  (out_ch,), jnp.float32),
        "w_mask": std * jax.random.normal(k_wm, (out_ch, in_ch, ksize, ksize), jnp.float32),
        "b_mask": std * jax.random.normal(k_bm, (out_ch,), jnp.float32),
    }

    out = gated_deconv2d_forward(x, params, scale=scale, kernel_size=ksize)
    out = jax.block_until_ready(out)

    ref = _reference_forward(x, params, scale=scale, kernel_size=ksize)
    assert out.shape == (N, out_ch, H * scale, W * scale), out.shape
    max_err = float(jnp.max(jnp.abs(out - ref)))
    assert jnp.allclose(out, ref, atol=5e-3, rtol=5e-3), max_err

    print("KERNEL_OK")
</pallas_src>

<mosaic_0001>
module attributes {stable_mosaic.version = 11 : i64} {
  func.func @_gated_deconv_kernel(%arg0: i32, %arg1: memref<1x4x896xf32, #tpu.memory_space<vmem>>, %arg2: memref<32x36xf32, #tpu.memory_space<vmem>>, %arg3: memref<32x1xf32, #tpu.memory_space<vmem>>, %arg4: memref<1x16x768xf32, #tpu.memory_space<vmem>>, %arg5: memref<36x768xf32, #tpu.memory_space<vmem>>) attributes {dimension_semantics = [#tpu.dimension_semantics<parallel>], iteration_bounds = array<i64: 1>, scalar_prefetch = 0 : i64, scratch_operands = 1 : i64, tpu.core_type = #tpu.core_type<tc>, window_params = [{transform_indices = @transform_0, window_bounds = array<i64: 1, 4, 896>}, {pipeline_mode = #tpu.pipeline_mode<synchronous>, transform_indices = @transform_1, window_bounds = array<i64: 32, 36>}, {pipeline_mode = #tpu.pipeline_mode<synchronous>, transform_indices = @transform_2, window_bounds = array<i64: 32, 1>}, {transform_indices = @transform_3, window_bounds = array<i64: 1, 16, 768>}]} {
    %c0 = arith.constant 0 : index
    %c0_0 = arith.constant 0 : index
    %c0_1 = arith.constant 0 : index
    %0 = vector.load %arg1[%c0, %c0_0, %c0_1] : memref<1x4x896xf32, #tpu.memory_space<vmem>>, vector<1x4x768xf32>
    %1 = vector.shape_cast %0 : vector<1x4x768xf32> to vector<4x768xf32>
    %c0_2 = arith.constant 0 : index
    %c0_3 = arith.constant 0 : index
    %2 = vector.load %arg5[%c0_2, %c0_3] : memref<36x768xf32, #tpu.memory_space<vmem>>, vector<4x768xf32>
    tpu.vector_store %arg5[%c0_2, %c0_3], %1 {strides = array<i32>} : memref<36x768xf32, #tpu.memory_space<vmem>>, vector<4x768xf32>,
    %c0_4 = arith.constant 0 : index
    %c0_5 = arith.constant 0 : index
    %c1 = arith.constant 1 : index
    %3 = vector.load %arg1[%c0_4, %c0_5, %c1] : memref<1x4x896xf32, #tpu.memory_space<vmem>>, vector<1x4x768xf32>
    %4 = vector.shape_cast %3 : vector<1x4x768xf32> to vector<4x768xf32>
    %c4 = arith.constant 4 : index
    %c0_6 = arith.constant 0 : index
    %5 = vector.load %arg5[%c4, %c0_6] : memref<36x768xf32, #tpu.memory_space<vmem>>, vector<4x768xf32>
    tpu.vector_store %arg5[%c4, %c0_6], %4 {strides = array<i32>} : memref<36x768xf32, #tpu.memory_space<vmem>>, vector<4x768xf32>,
    %c0_7 = arith.constant 0 : index
    %c0_8 = arith.constant 0 : index
    %c2 = arith.constant 2 : index
    %6 = vector.load %arg1[%c0_7, %c0_8, %c2] : memref<1x4x896xf32, #tpu.memory_space<vmem>>, vector<1x4x768xf32>
    %7 = vector.shape_cast %6 : vector<1x4x768xf32> to vector<4x768xf32>
    %c8 = arith.constant 8 : index
    %c0_9 = arith.constant 0 : index
    %8 = vector.load %arg5[%c8, %c0_9] : memref<36x768xf32, #tpu.memory_space<vmem>>, vector<4x768xf32>
    tpu.vector_store %arg5[%c8, %c0_9], %7 {strides = array<i32>} : memref<36x768xf32, #tpu.memory_space<vmem>>, vector<4x768xf32>,
    %c0_10 = arith.constant 0 : index
    %c0_11 = arith.constant 0 : index
    %c18 = arith.constant 18 : index
    %9 = vector.load %arg1[%c0_10, %c0_11, %c18] : memref<1x4x896xf32, #tpu.memory_space<vmem>>, vector<1x4x768xf32>
    %10 = vector.shape_cast %9 : vector<1x4x768xf32> to vector<4x768xf32>
    %c12 = arith.constant 12 : index
    %c0_12 = arith.constant 0 : index
    %11 = vector.load %arg5[%c12, %c0_12] : memref<36x768xf32, #tpu.memory_space<vmem>>, vector<4x768xf32>
    tpu.vector_store %arg5[%c12, %c0_12], %10 {strides = array<i32>} : memref<36x768xf32, #tpu.memory_space<vmem>>, vector<4x768xf32>,
    %c0_13 = arith.constant 0 : index
    %c0_14 = arith.constant 0 : index
    %c19 = arith.constant 19 : index
    %12 = vector.load %arg1[%c0_13, %c0_14, %c19] : memref<1x4x896xf32, #tpu.memory_space<vmem>>, vector<1x4x768xf32>
    %13 = vector.shape_cast %12 : vector<1x4x768xf32> to vector<4x768xf32>
    %c16 = arith.constant 16 : index
    %c0_15 = arith.constant 0 : index
    %14 = vector.load %arg5[%c16, %c0_15] : memref<36x768xf32, #tpu.memory_space<vmem>>, vector<4x768xf32>
    tpu.vector_store %arg5[%c16, %c0_15], %13 {strides = array<i32>} : memref<36x768xf32, #tpu.memory_space<vmem>>, vector<4x768xf32>,
    %c0_16 = arith.constant 0 : index
    %c0_17 = arith.constant 0 : index
    %c20 = arith.constant 20 : index
    %15 = vector.load %arg1[%c0_16, %c0_17, %c20] : memref<1x4x896xf32, #tpu.memory_space<vmem>>, vector<1x4x768xf32>
    %16 = vector.shape_cast %15 : vector<1x4x768xf32> to vector<4x768xf32>
    %c20_18 = arith.constant 20 : index
    %c0_19 = arith.constant 0 : index
    %17 = vector.load %arg5[%c20_18, %c0_19] : memref<36x768xf32, #tpu.memory_space<vmem>>, vector<4x768xf32>
    tpu.vector_store %arg5[%c20_18, %c0_19], %16 {strides = array<i32>} : memref<36x768xf32, #tpu.memory_space<vmem>>, vector<4x768xf32>,
    %c0_20 = arith.constant 0 : index
    %c0_21 = arith.constant 0 : index
    %c36 = arith.constant 36 : index
    %18 = vector.load %arg1[%c0_20, %c0_21, %c36] : memref<1x4x896xf32, #tpu.memory_space<vmem>>, vector<1x4x768xf32>
    %19 = vector.shape_cast %18 : vector<1x4x768xf32> to vector<4x768xf32>
    %c24 = arith.constant 24 : index
    %c0_22 = arith.constant 0 : index
    %20 = vector.load %arg5[%c24, %c0_22] : memref<36x768xf32, #tpu.memory_space<vmem>>, vector<4x768xf32>
    tpu.vector_store %arg5[%c24, %c0_22], %19 {strides = array<i32>} : memref<36x768xf32, #tpu.memory_space<vmem>>, vector<4x768xf32>,
    %c0_23 = arith.constant 0 : index
    %c0_24 = arith.constant 0 : index
    %c37 = arith.constant 37 : index
    %21 = vector.load %arg1[%c0_23, %c0_24, %c37] : memref<1x4x896xf32, #tpu.memory_space<vmem>>, vector<1x4x768xf32>
    %22 = vector.shape_cast %21 : vector<1x4x768xf32> to vector<4x768xf32>
    %c28 = arith.constant 28 : index
    %c0_25 = arith.constant 0 : index
    %23 = vector.load %arg5[%c28, %c0_25] : memref<36x768xf32, #tpu.memory_space<vmem>>, vector<4x768xf32>
    tpu.vector_store %arg5[%c28, %c0_25], %22 {strides = array<i32>} : memref<36x768xf32, #tpu.memory_space<vmem>>, vector<4x768xf32>,
    %c0_26 = arith.constant 0 : index
    %c0_27 = arith.constant 0 : index
    %c38 = arith.constant 38 : index
    %24 = vector.load %arg1[%c0_26, %c0_27, %c38] : memref<1x4x896xf32, #tpu.memory_space<vmem>>, vector<1x4x768xf32>
    %25 = vector.shape_cast %24 : vector<1x4x768xf32> to vector<4x768xf32>
    %c32 = arith.constant 32 : index
    %c0_28 = arith.constant 0 : index
    %26 = vector.load %arg5[%c32, %c0_28] : memref<36x768xf32, #tpu.memory_space<vmem>>, vector<4x768xf32>
    tpu.vector_store %arg5[%c32, %c0_28], %25 {strides = array<i32>} : memref<36x768xf32, #tpu.memory_space<vmem>>, vector<4x768xf32>,
    %c0_29 = arith.constant 0 : index
    %c0_30 = arith.constant 0 : index
    %27 = vector.load %arg2[%c0_29, %c0_30] : memref<32x36xf32, #tpu.memory_space<vmem>>, vector<32x36xf32>
    %c0_31 = arith.constant 0 : index
    %c0_32 = arith.constant 0 : index
    %28 = vector.load %arg5[%c0_31, %c0_32] : memref<36x768xf32, #tpu.memory_space<vmem>>, vector<36x768xf32>
    %cst = arith.constant dense<0.000000e+00> : vector<32x768xf32>
    %29 = tpu.matmul %27, %28, %cst {dimension_numbers = #tpu.dot_dimension_numbers<[1], [0], [0], [1], [0, 0, 1, 1], [], []>} : vector<32x36xf32>, vector<36x768xf32>, vector<32x768xf32> -> vector<32x768xf32>
    %c0_33 = arith.constant 0 : index
    %c0_34 = arith.constant 0 : index
    %30 = vector.load %arg3[%c0_33, %c0_34] : memref<32x1xf32, #tpu.memory_space<vmem>>, vector<32x1xf32>
    %31 = vector.broadcast %30 : vector<32x1xf32> to vector<32x768xf32>
    %32 = arith.addf %29, %31 : vector<32x768xf32>
    %33 = vector.extract_strided_slice %32 {offsets = [0, 0], sizes = [16, 768], strides = [1, 1]} : vector<32x768xf32> to vector<16x768xf32>
    %34 = vector.extract_strided_slice %32 {offsets = [16, 0], sizes = [16, 768], strides = [1, 1]} : vector<32x768xf32> to vector<16x768xf32>
    %cst_35 = arith.constant 0.000000e+00 : f32
    %35 = vector.broadcast %cst_35 : f32 to vector<16x768xf32>
    %36 = arith.cmpf ogt, %33, %35 : vector<16x768xf32>
    %cst_36 = arith.constant 0.000000e+00 : f32
    %37 = vector.broadcast %cst_36 : f32 to vector<16x768xf32>
    %38 = arith.minimumf %33, %37 : vector<16x768xf32>
    %39 = math.exp %38 : vector<16x768xf32>
    %cst_37 = arith.constant 1.000000e+00 : f32
    %40 = vector.broadcast %cst_37 : f32 to vector<16x768xf32>
    %41 = arith.subf %39, %40 : vector<16x768xf32>
    %42 = arith.select %36, %33, %41 : vector<16x768xi1>, vector<16x768xf32>
    %cst_38 = arith.constant 0.000000e+00 : f32
    %43 = vector.broadcast %cst_38 : f32 to vector<16x768xf32>
    %44 = arith.subf %43, %34 : vector<16x768xf32>
    %45 = math.exp %44 : vector<16x768xf32>
    %cst_39 = arith.constant 1.000000e+00 : f32
    %46 = vector.broadcast %cst_39 : f32 to vector<16x768xf32>
    %47 = arith.addf %46, %45 : vector<16x768xf32>
    %cst_40 = arith.constant 1.000000e+00 : f32
    %48 = vector.broadcast %cst_40 : f32 to vector<16x768xf32>
    %49 = arith.divf %48, %47 : vector<16x768xf32>
    %50 = arith.mulf %42, %49 : vector<16x768xf32>
    %c0_41 = arith.constant 0 : index
    %c0_42 = arith.constant 0 : index
    %c0_43 = arith.constant 0 : index
    %51 = vector.load %arg4[%c0_41, %c0_42, %c0_43] : memref<1x16x768xf32, #tpu.memory_space<vmem>>, vector<1x16x768xf32>
    %52 = vector.shape_cast %51 : vector<1x16x768xf32> to vector<16x768xf32>
    %53 = vector.shape_cast %50 : vector<16x768xf32> to vector<1x16x768xf32>
    tpu.vector_store %arg4[%c0_41, %c0_42, %c0_43], %53 {strides = array<i32>} : memref<1x16x768xf32, #tpu.memory_space<vmem>>, vector<1x16x768xf32>,
    return
  }
  func.func @transform_0(%arg0: i32) -> (i32, i32, i32) {
    %c0_i32 = arith.constant 0 : i32
    %c0_i32_0 = arith.constant 0 : i32
    %c0_i32_1 = arith.constant 0 : i32
    return %arg0, %c0_i32, %c0_i32_0 : i32, i32, i32
  }
  func.func @transform_1(%arg0: i32) -> (i32, i32) {
    %c0_i32 = arith.constant 0 : i32
    %c0_i32_0 = arith.constant 0 : i32
    %c0_i32_1 = arith.constant 0 : i32
    return %c0_i32, %c0_i32_0 : i32, i32
  }
  func.func @transform_2(%arg0: i32) -> (i32, i32) {
    %c0_i32 = arith.constant 0 : i32
    %c0_i32_0 = arith.constant 0 : i32
    %c0_i32_1 = arith.constant 0 : i32
    return %c0_i32, %c0_i32_0 : i32, i32
  }
  func.func @transform_3(%arg0: i32) -> (i32, i32, i32) {
    %c0_i32 = arith.constant 0 : i32
    %c0_i32_0 = arith.constant 0 : i32
    %c0_i32_1 = arith.constant 0 : i32
    return %arg0, %c0_i32, %c0_i32_0 : i32, i32, i32
  }
}

</mosaic_0001>

<llo_original>
// kernel: tpu_custom_call.1
$region0: #{tpu_custom_call.1}
  #allocation0 [shape = 'u32[]', space=smem, size = 0x4, offset = 0x4, fixed_abs, tag = 'smem constant byte address 0x4 - core index']
  #allocation1 [shape = 'u32[72,128]{1,0:T(1,128)}', space=vmem, size = 0x9000, scoped, tag = 'internal scratch']
  #allocation2 [shape = 'f32[36,768]{1,0:T(8,128)}', space=vmem, size = 0x1e000, scoped, tag = 'scratch operand']
  %s0 = inlined_call_operand.hbm [shape: f32[1,4,896], index: 0, kind: input, shape index: {}]
  %s1 = inlined_call_operand.vmem [shape: f32[32,36], index: 1, kind: input, shape index: {}]
  %s2 = inlined_call_operand.vmem [shape: f32[32,1], index: 2, kind: input, shape index: {}]
  %s3 = inlined_call_operand.hbm [shape: f32[1,16,768], index: 3, kind: output, shape index: {}]
  %s4 = sld [smem:[#allocation0]]
  $region26: #{tpu_custom_call.1} parent=0
    _
  %s6 = ssub.s32 1, %s4
  %s7 = scalar_select 0, %s6, %s4
  $region1: #{tpu_custom_call.1} parent=0
    #allocation3 [shape = 'u8[14336]{0}', space=vmem, size = 0x3800, scoped, tag = 'input window, operand 0, single buffered']
    #allocation4 [shape = 's32[1]{0}', space=sflag, size = 0x4, scoped, tag = 'scoped memory for tpu_custom_call.1']
    #allocation5 [shape = 's32[1]{0}', space=sflag, size = 0x4, scoped, tag = 'scoped memory for tpu_custom_call.1']
    #allocation6 [shape = 'u8[49152]{0}', space=vmem, size = 0xc000, scoped, tag = 'output window, operand 0, single buffered']
    %8 = vsyncpa [#allocation4], 0
    %9 = vsyncpa [#allocation5], 0
    // Predicated region
    $region2: #{tpu_custom_call.1} parent=1 // pred_check
      _
    $region3: #{tpu_custom_call.1} parent=1 // pred_check_branch
      %11 = sbr.rel (0) target = $region5
    $region4: #{tpu_custom_call.1} parent=1 // pred_region
      %13 = vsyncadd [#allocation4], 0
      %s15 = sshll.u32 %s0, 4
      %s16 = int_to_ptr.hbm [resolvable:$true] %s15
      %s17 = sshll.u32 [#allocation3], 4
      %s18 = int_to_ptr.vmem [resolvable:$true] %s17
      %20 = dma.hbm_to_vmem [thread:$0]  %s16, 448, %s18, [#allocation4]
    $region5: #{tpu_custom_call.1} parent=1 // pred_fallthru
      _
    // Predicated region
    $region6: #{tpu_custom_call.1} parent=1 // pred_check
      _
    $region7: #{tpu_custom_call.1} parent=1 // pred_check_branch
      %22 = sbr.rel (0) target = $region9
    $region8: #{tpu_custom_call.1} parent=1 // pred_region
      _
    $region9: #{tpu_custom_call.1} parent=1 // pred_fallthru
      _
    // Predicated region
    $region10: #{tpu_custom_call.1} parent=1 // pred_check
      _
    $region11: #{tpu_custom_call.1} parent=1 // pred_check_branch
      %24 = sbr.rel (0) target = $region13
    $region12: #{tpu_custom_call.1} parent=1 // pred_region
      _
    $region13: #{tpu_custom_call.1} parent=1 // pred_fallthru
      _
    // Predicated region
    $region14: #{tpu_custom_call.1} parent=1 // pred_check
      _
    $region15: #{tpu_custom_call.1} parent=1 // pred_check_branch
      %26 = sbr.rel (0) target = $region17
    $region16: #{tpu_custom_call.1} parent=1 // pred_region
      %28 = dma.done [#allocation4], 448
    $region17: #{tpu_custom_call.1} parent=1 // pred_fallthru
      _
    %v29 = vld [vmem:[#allocation3] sm:$0xff]
    %v30 = vld [vmem:[#allocation3 + $0x8] sm:$0xff]
    %v31 = vld [vmem:[#allocation3 + $0x10] sm:$0xff]
    %35 = vst [vmem:[#allocation1] ss:$2 sm:$0xff] %v29
    %s36 = scalar_lea.vmem [#allocation1], 16
    %37 = vst [vmem:[%s36] ss:$2 sm:$0xff] %v30
    %s38 = scalar_lea.vmem [#allocation1], 32
    %39 = vst [vmem:[%s38] ss:$2 sm:$0xff] %v31
    %v40 = vld.sshfl [vmem:[#allocation1] sm:$0xff pattern:$0x75316420]
    %v41 = vld.sshfl [vmem:[#allocation1 + $0x8] sm:$0xff pattern:$0x75316420]
    %v42 = vld.sshfl [vmem:[#allocation1 + $0x10] sm:$0xff pattern:$0x75316420]
    %v43 = vld.sshfl [vmem:[#allocation1 + $0x18] sm:$0xff pattern:$0x75316420]
    %v44 = vld.sshfl [vmem:[#allocation1 + $0x20] sm:$0xff pattern:$0x75316420]
    %v45 = vld.sshfl [vmem:[#allocation1 + $0x28] sm:$0xff pattern:$0x75316420]
    %52 = vst [vmem:[#allocation2] sm:$0xf] %v40
    %53 = vst [vmem:[#allocation2 + $0x8] sm:$0xf] %v41
    %54 = vst [vmem:[#allocation2 + $0x10] sm:$0xf] %v42
    %55 = vst [vmem:[#allocation2 + $0x18] sm:$0xf] %v43
    %56 = vst [vmem:[#allocation2 + $0x20] sm:$0xf] %v44
    %57 = vst [vmem:[#allocation2 + $0x28] sm:$0xf] %v45
    %v58 = vld [vmem:[#allocation3] sm:$0xff]
    %v59 = vld [vmem:[#allocation3 + $0x8] sm:$0xff]
    %v60 = vld [vmem:[#allocation3 + $0x10] sm:$0xff]
    %v61 = vld [vmem:[#allocation3 + $0x18] sm:$0xf]
    %s66 = scalar_lea.vmem [#allocation1], 1
    %67 = vst [vmem:[%s66] ss:$2 sm:$0xff] %v58
    %s68 = scalar_lea.vmem [#allocation1], 17
    %69 = vst [vmem:[%s68] ss:$2 sm:$0xff] %v59
    %s70 = scalar_lea.vmem [#allocation1], 33
    %71 = vst [vmem:[%s70] ss:$2 sm:$0xff] %v60
    %s72 = scalar_lea.vmem [#allocation1], 49
    %73 = vst [vmem:[%s72] ss:$2 sm:$0xff] %v61
    %v74 = vld.sshfl [vmem:[#allocation1] sm:$0xff pattern:$0x75316420]
    %v75 = vld.sshfl [vmem:[#allocation1 + $0x8] sm:$0xff pattern:$0x75316420]
    %v76 = vld.sshfl [vmem:[#allocation1 + $0x10] sm:$0xff pattern:$0x75316420]
    %v77 = vld.sshfl [vmem:[#allocation1 + $0x18] sm:$0xff pattern:$0x75316420]
    %v78 = vld.sshfl [vmem:[#allocation1 + $0x20] sm:$0xff pattern:$0x75316420]
    %v79 = vld.sshfl [vmem:[#allocation1 + $0x28] sm:$0xff pattern:$0x75316420]
    %v80 = vld.sshfl [vmem:[#allocation1 + $0x30] sm:$0xff pattern:$0x75316420]
    %81 = vrot.lane.b32.xlu0 %v74, 127
    %v82 = vpop.permute.xlu0 %81
    %83 = vrot.lane.b32.xlu0 %v75, 127
    %v84 = vpop.permute.xlu0 %83
    %85 = vrot.lane.b32.xlu0 %v76, 127
    %v86 = vpop.permute.xlu0 %85
    %87 = vrot.lane.b32.xlu0 %v77, 127
    %v88 = vpop.permute.xlu0 %87
    %89 = vrot.lane.b32.xlu0 %v78, 127
    %v90 = vpop.permute.xlu0 %89
    %91 = vrot.lane.b32.xlu0 %v79, 127
    %v92 = vpop.permute.xlu0 %91
    %93 = vrot.lane.b32.xlu0 %v80, 127
    %v94 = vpop.permute.xlu0 %93
    %vm95 = vcmask 1039360
    %v96 = vsel %vm95, %v82, %v84
    %v97 = vsel %vm95, %v84, %v86
    %v98 = vsel %vm95, %v86, %v88
    %v99 = vsel %vm95, %v88, %v90
    %v100 = vsel %vm95, %v90, %v92
    %v101 = vsel %vm95, %v92, %v94
    %108 = vst [vmem:[#allocation2] sm:$0xf0] %v96
    %109 = vst [vmem:[#allocation2 + $0x8] sm:$0xf0] %v97
    %110 = vst [vmem:[#allocation2 + $0x10] sm:$0xf0] %v98
    %111 = vst [vmem:[#allocation2 + $0x18] sm:$0xf0] %v99
    %112 = vst [vmem:[#allocation2 + $0x20] sm:$0xf0] %v100
    %113 = vst [vmem:[#allocation2 + $0x28] sm:$0xf0] %v101
    %v114 = vld [vmem:[#allocation3] sm:$0xff]
    %v115 = vld [vmem:[#allocation3 + $0x8] sm:$0xff]
    %v116 = vld [vmem:[#allocation3 + $0x10] sm:$0xff]
    %v117 = vld [vmem:[#allocation3 + $0x18] sm:$0xf]
    %122 = vst [vmem:[#allocation1] ss:$2 sm:$0xff] %v114
    %s123 = scalar_lea.vmem [#allocation1], 16
    %124 = vst [vmem:[%s123] ss:$2 sm:$0xff] %v115
    %s125 = scalar_lea.vmem [#allocation1], 32
    %126 = vst [vmem:[%s125] ss:$2 sm:$0xff] %v116
    %s127 = scalar_lea.vmem [#allocation1], 48
    %128 = vst [vmem:[%s127] ss:$2 sm:$0xff] %v117
    %v129 = vld.sshfl [vmem:[#allocation1] sm:$0xff pattern:$0x75316420]
    %v130 = vld.sshfl [vmem:[#allocation1 + $0x8] sm:$0xff pattern:$0x75316420]
    %v131 = vld.sshfl [vmem:[#allocation1 + $0x10] sm:$0xff pattern:$0x75316420]
    %v132 = vld.sshfl [vmem:[#allocation1 + $0x18] sm:$0xff pattern:$0x75316420]
    %v133 = vld.sshfl [vmem:[#allocation1 + $0x20] sm:$0xff pattern:$0x75316420]
    %v134 = vld.sshfl [vmem:[#allocation1 + $0x28] sm:$0xff pattern:$0x75316420]
    %v135 = vld.sshfl [vmem:[#allocation1 + $0x30] sm:$0xff pattern:$0x75316420]
    %136 = vrot.lane.b32.xlu0 %v129, 126
    %v137 = vpop.permute.xlu0 %136
    %138 = vrot.lane.b32.xlu0 %v130, 126
    %v139 = vpop.permute.xlu0 %138
    %140 = vrot.lane.b32.xlu0 %v131, 126
    %v141 = vpop.permute.xlu0 %140
    %142 = vrot.lane.b32.xlu0 %v132, 126
    %v143 = vpop.permute.xlu0 %142
    %144 = vrot.lane.b32.xlu0 %v133, 126
    %v145 = vpop.permute.xlu0 %144
    %146 = vrot.lane.b32.xlu0 %v134, 126
    %v147 = vpop.permute.xlu0 %146
    %148 = vrot.lane.b32.xlu0 %v135, 126
    %v149 = vpop.permute.xlu0 %148
    %vm150 = vcmask 1031168
    %v151 = vsel %vm150, %v137, %v139
    %v152 = vsel %vm150, %v139, %v141
    %v153 = vsel %vm150, %v141, %v143
    %v154 = vsel %vm150, %v143, %v145
    %v155 = vsel %vm150, %v145, %v147
    %v156 = vsel %vm150, %v147, %v149
    %163 = vst [vmem:[#allocation2 + $0x30] sm:$0xf] %v151
    %164 = vst [vmem:[#allocation2 + $0x38] sm:$0xf] %v152
    %165 = vst [vmem:[#allocation2 + $0x40] sm:$0xf] %v153
    %166 = vst [vmem:[#allocation2 + $0x48] sm:$0xf] %v154
    %167 = vst [vmem:[#allocation2 + $0x50] sm:$0xf] %v155
    %168 = vst [vmem:[#allocation2 + $0x58] sm:$0xf] %v156
    %v169 = vld [vmem:[#allocation3] sm:$0xff]
    %v170 = vld [vmem:[#allocation3 + $0x8] sm:$0xff]
    %v171 = vld [vmem:[#allocation3 + $0x10] sm:$0xff]
    %v172 = vld [vmem:[#allocation3 + $0x18] sm:$0xf]
    %s177 = scalar_lea.vmem [#allocation1], 1
    %178 = vst [vmem:[%s177] ss:$2 sm:$0xff] %v169
    %s179 = scalar_lea.vmem [#allocation1], 17
    %180 = vst [vmem:[%s179] ss:$2 sm:$0xff] %v170
    %s181 = scalar_lea.vmem [#allocation1], 33
    %182 = vst [vmem:[%s181] ss:$2 sm:$0xff] %v171
    %s183 = scalar_lea.vmem [#allocation1], 49
    %184 = vst [vmem:[%s183] ss:$2 sm:$0xff] %v172
    %v185 = vld.sshfl [vmem:[#allocation1] sm:$0xff pattern:$0x75316420]
    %v186 = vld.sshfl [vmem:[#allocation1 + $0x8] sm:$0xff pattern:$0x75316420]
    %v187 = vld.sshfl [vmem:[#allocation1 + $0x10] sm:$0xff pattern:$0x75316420]
    %v188 = vld.sshfl [vmem:[#allocation1 + $0x18] sm:$0xff pattern:$0x75316420]
    %v189 = vld.sshfl [vmem:[#allocation1 + $0x20] sm:$0xff pattern:$0x75316420]
    %v190 = vld.sshfl [vmem:[#allocation1 + $0x28] sm:$0xff pattern:$0x75316420]
    %v191 = vld.sshfl [vmem:[#allocation1 + $0x30] sm:$0xff pattern:$0x75316420]
    %192 = vrot.lane.b32.xlu0 %v185, 110
    %v193 = vpop.permute.xlu0 %192
    %194 = vrot.lane.b32.xlu0 %v186, 110
    %v195 = vpop.permute.xlu0 %194
    %196 = vrot.lane.b32.xlu0 %v187, 110
    %v197 = vpop.permute.xlu0 %196
    %198 = vrot.lane.b32.xlu0 %v188, 110
    %v199 = vpop.permute.xlu0 %198
    %200 = vrot.lane.b32.xlu0 %v189, 110
    %v201 = vpop.permute.xlu0 %200
    %202 = vrot.lane.b32.xlu0 %v190, 110
    %v203 = vpop.permute.xlu0 %202
    %204 = vrot.lane.b32.xlu0 %v191, 110
    %v205 = vpop.permute.xlu0 %204
    %vm206 = vcmask 900096
    %v207 = vsel %vm206, %v193, %v195
    %v208 = vsel %vm206, %v195, %v197
    %v209 = vsel %vm206, %v197, %v199
    %v210 = vsel %vm206, %v199, %v201
    %v211 = vsel %vm206, %v201, %v203
    %v212 = vsel %vm206, %v203, %v205
    %219 = vst [vmem:[#allocation2 + $0x30] sm:$0xf0] %v207
    %220 = vst [vmem:[#allocation2 + $0x38] sm:$0xf0] %v208
    %221 = vst [vmem:[#allocation2 + $0x40] sm:$0xf0] %v209
    %222 = vst [vmem:[#allocation2 + $0x48] sm:$0xf0] %v210
    %223 = vst [vmem:[#allocation2 + $0x50] sm:$0xf0] %v211
    %224 = vst [vmem:[#allocation2 + $0x58] sm:$0xf0] %v212
    %v225 = vld [vmem:[#allocation3] sm:$0xff]
    %v226 = vld [vmem:[#allocation3 + $0x8] sm:$0xff]
    %v227 = vld [vmem:[#allocation3 + $0x10] sm:$0xff]
    %v228 = vld [vmem:[#allocation3 + $0x18] sm:$0xf]
    %233 = vst [vmem:[#allocation1] ss:$2 sm:$0xff] %v225
    %s234 = scalar_lea.vmem [#allocation1], 16
    %235 = vst [vmem:[%s234] ss:$2 sm:$0xff] %v226
    %s236 = scalar_lea.vmem [#allocation1], 32
    %237 = vst [vmem:[%s236] ss:$2 sm:$0xff] %v227
    %s238 = scalar_lea.vmem [#allocation1], 48
    %239 = vst [vmem:[%s238] ss:$2 sm:$0xff] %v228
    %v240 = vld.sshfl [vmem:[#allocation1] sm:$0xff pattern:$0x75316420]
    %v241 = vld.sshfl [vmem:[#allocation1 + $0x8] sm:$0xff pattern:$0x75316420]
    %v242 = vld.sshfl [vmem:[#allocation1 + $0x10] sm:$0xff pattern:$0x75316420]
    %v243 = vld.sshfl [vmem:[#allocation1 + $0x18] sm:$0xff pattern:$0x75316420]
    %v244 = vld.sshfl [vmem:[#allocation1 + $0x20] sm:$0xff pattern:$0x75316420]
    %v245 = vld.sshfl [vmem:[#allocation1 + $0x28] sm:$0xff pattern:$0x75316420]
    %v246 = vld.sshfl [vmem:[#allocation1 + $0x30] sm:$0xff pattern:$0x75316420]
    %247 = vrot.lane.b32.xlu0 %v240, 109
    %v248 = vpop.permute.xlu0 %247
    %249 = vrot.lane.b32.xlu0 %v241, 109
    %v250 = vpop.permute.xlu0 %249
    %251 = vrot.lane.b32.xlu0 %v242, 109
    %v252 = vpop.permute.xlu0 %251
    %253 = vrot.lane.b32.xlu0 %v243, 109
    %v254 = vpop.permute.xlu0 %253
    %255 = vrot.lane.b32.xlu0 %v244, 109
    %v256 = vpop.permute.xlu0 %255
    %257 = vrot.lane.b32.xlu0 %v245, 109
    %v258 = vpop.permute.xlu0 %257
    %259 = vrot.lane.b32.xlu0 %v246, 109
    %v260 = vpop.permute.xlu0 %259
    %vm261 = vcmask 891904
    %v262 = vsel %vm261, %v248, %v250
    %v263 = vsel %vm261, %v250, %v252
    %v264 = vsel %vm261, %v252, %v254
    %v265 = vsel %vm261, %v254, %v256
    %v266 = vsel %vm261, %v256, %v258
    %v267 = vsel %vm261, %v258, %v260
    %274 = vst [vmem:[#allocation2 + $0x60] sm:$0xf] %v262
    %275 = vst [vmem:[#allocation2 + $0x68] sm:$0xf] %v263
    %276 = vst [vmem:[#allocation2 + $0x70] sm:$0xf] %v264
    %277 = vst [vmem:[#allocation2 + $0x78] sm:$0xf] %v265
    %278 = vst [vmem:[#allocation2 + $0x80] sm:$0xf] %v266
    %279 = vst [vmem:[#allocation2 + $0x88] sm:$0xf] %v267
    %v280 = vld [vmem:[#allocation3] sm:$0xff]
    %v281 = vld [vmem:[#allocation3 + $0x8] sm:$0xff]
    %v282 = vld [vmem:[#allocation3 + $0x10] sm:$0xff]
    %v283 = vld [vmem:[#allocation3 + $0x18] sm:$0xf]
    %s288 = scalar_lea.vmem [#allocation1], 1
    %289 = vst [vmem:[%s288] ss:$2 sm:$0xff] %v280
    %s290 = scalar_lea.vmem [#allocation1], 17
    %291 = vst [vmem:[%s290] ss:$2 sm:$0xff] %v281
    %s292 = scalar_lea.vmem [#allocation1], 33
    %293 = vst [vmem:[%s292] ss:$2 sm:$0xff] %v282
    %s294 = scalar_lea.vmem [#allocation1], 49
    %295 = vst [vmem:[%s294] ss:$2 sm:$0xff] %v283
    %v296 = vld.sshfl [vmem:[#allocation1] sm:$0xff pattern:$0x75316420]
    %v297 = vld.sshfl [vmem:[#allocation1 + $0x8] sm:$0xff pattern:$0x75316420]
    %v298 = vld.sshfl [vmem:[#allocation1 + $0x10] sm:$0xff pattern:$0x75316420]
    %v299 = vld.sshfl [vmem:[#allocation1 + $0x18] sm:$0xff pattern:$0x75316420]
    %v300 = vld.sshfl [vmem:[#allocation1 + $0x20] sm:$0xff pattern:$0x75316420]
    %v301 = vld.sshfl [vmem:[#allocation1 + $0x28] sm:$0xff pattern:$0x75316420]
    %v302 = vld.sshfl [vmem:[#allocation1 + $0x30] sm:$0xff pattern:$0x75316420]
    %303 = vrot.lane.b32.xlu0 %v296, 108
    %v304 = vpop.permute.xlu0 %303
    %305 = vrot.lane.b32.xlu0 %v297, 108
    %v306 = vpop.permute.xlu0 %305
    %307 = vrot.lane.b32.xlu0 %v298, 108
    %v308 = vpop.permute.xlu0 %307
    %309 = vrot.lane.b32.xlu0 %v299, 108
    %v310 = vpop.permute.xlu0 %309
    %311 = vrot.lane.b32.xlu0 %v300, 108
    %v312 = vpop.permute.xlu0 %311
    %313 = vrot.lane.b32.xlu0 %v301, 108
    %v314 = vpop.permute.xlu0 %313
    %315 = vrot.lane.b32.xlu0 %v302, 108
    %v316 = vpop.permute.xlu0 %315
    %vm317 = vcmask 883712
    %v318 = vsel %vm317, %v304, %v306
    %v319 = vsel %vm317, %v306, %v308
    %v320 = vsel %vm317, %v308, %v310
    %v321 = vsel %vm317, %v310, %v312
    %v322 = vsel %vm317, %v312, %v314
    %v323 = vsel %vm317, %v314, %v316
    %330 = vst [vmem:[#allocation2 + $0x60] sm:$0xf0] %v318
    %331 = vst [vmem:[#allocation2 + $0x68] sm:$0xf0] %v319
    %332 = vst [vmem:[#allocation2 + $0x70] sm:$0xf0] %v320
    %333 = vst [vmem:[#allocation2 + $0x78] sm:$0xf0] %v321
    %334 = vst [vmem:[#allocation2 + $0x80] sm:$0xf0] %v322
    %335 = vst [vmem:[#allocation2 + $0x88] sm:$0xf0] %v323
    %v336 = vld [vmem:[#allocation3] sm:$0xff]
    %v337 = vld [vmem:[#allocation3 + $0x8] sm:$0xff]
    %v338 = vld [vmem:[#allocation3 + $0x10] sm:$0xff]
    %v339 = vld [vmem:[#allocation3 + $0x18] sm:$0xf]
    %344 = vst [vmem:[#allocation1] ss:$2 sm:$0xff] %v336
    %s345 = scalar_lea.vmem [#allocation1], 16
    %346 = vst [vmem:[%s345] ss:$2 sm:$0xff] %v337
    %s347 = scalar_lea.vmem [#allocation1], 32
    %348 = vst [vmem:[%s347] ss:$2 sm:$0xff] %v338
    %s349 = scalar_lea.vmem [#allocation1], 48
    %350 = vst [vmem:[%s349] ss:$2 sm:$0xff] %v339
    %v351 = vld.sshfl [vmem:[#allocation1] sm:$0xff pattern:$0x75316420]
    %v352 = vld.sshfl [vmem:[#allocation1 + $0x8] sm:$0xff pattern:$0x75316420]
    %v353 = vld.sshfl [vmem:[#allocation1 + $0x10] sm:$0xff pattern:$0x75316420]
    %v354 = vld.sshfl [vmem:[#allocation1 + $0x18] sm:$0xff pattern:$0x75316420]
    %v355 = vld.sshfl [vmem:[#allocation1 + $0x20] sm:$0xff pattern:$0x75316420]
    %v356 = vld.sshfl [vmem:[#allocation1 + $0x28] sm:$0xff pattern:$0x75316420]
    %v357 = vld.sshfl [vmem:[#allocation1 + $0x30] sm:$0xff pattern:$0x75316420]
    %358 = vrot.lane.b32.xlu0 %v351, 92
    %v359 = vpop.permute.xlu0 %358
    %360 = vrot.lane.b32.xlu0 %v352, 92
    %v361 = vpop.permute.xlu0 %360
    %362 = vrot.lane.b32.xlu0 %v353, 92
    %v363 = vpop.permute.xlu0 %362
    %364 = vrot.lane.b32.xlu0 %v354, 92
    %v365 = vpop.permute.xlu0 %364
    %366 = vrot.lane.b32.xlu0 %v355, 92
    %v367 = vpop.permute.xlu0 %366
    %368 = vrot.lane.b32.xlu0 %v356, 92
    %v369 = vpop.permute.xlu0 %368
    %370 = vrot.lane.b32.xlu0 %v357, 92
    %v371 = vpop.permute.xlu0 %370
    %vm372 = vcmask 752640
    %v373 = vsel %vm372, %v359, %v361
    %v374 = vsel %vm372, %v361, %v363
    %v375 = vsel %vm372, %v363, %v365
    %v376 = vsel %vm372, %v365, %v367
    %v377 = vsel %vm372, %v367, %v369
    %v378 = vsel %vm372, %v369, %v371
    %385 = vst [vmem:[#allocation2 + $0x90] sm:$0xf] %v373
    %386 = vst [vmem:[#allocation2 + $0x98] sm:$0xf] %v374
    %387 = vst [vmem:[#allocation2 + $0xa0] sm:$0xf] %v375
    %388 = vst [vmem:[#allocation2 + $0xa8] sm:$0xf] %v376
    %389 = vst [vmem:[#allocation2 + $0xb0] sm:$0xf] %v377
    %390 = vst [vmem:[#allocation2 + $0xb8] sm:$0xf] %v378
    %v391 = vld [vmem:[#allocation3] sm:$0xff]
    %v392 = vld [vmem:[#allocation3 + $0x8] sm:$0xff]
    %v393 = vld [vmem:[#allocation3 + $0x10] sm:$0xff]
    %v394 = vld [vmem:[#allocation3 + $0x18] sm:$0xf]
    %s399 = scalar_lea.vmem [#allocation1], 1
    %400 = vst [vmem:[%s399] ss:$2 sm:$0xff] %v391
    %s401 = scalar_lea.vmem [#allocation1], 17
    %402 = vst [vmem:[%s401] ss:$2 sm:$0xff] %v392
    %s403 = scalar_lea.vmem [#allocation1], 33
    %404 = vst [vmem:[%s403] ss:$2 sm:$0xff] %v393
    %s405 = scalar_lea.vmem [#allocation1], 49
    %406 = vst [vmem:[%s405] ss:$2 sm:$0xff] %v394
    %v407 = vld.sshfl [vmem:[#allocation1] sm:$0xff pattern:$0x75316420]
    %v408 = vld.sshfl [vmem:[#allocation1 + $0x8] sm:$0xff pattern:$0x75316420]
    %v409 = vld.sshfl [vmem:[#allocation1 + $0x10] sm:$0xff pattern:$0x75316420]
    %v410 = vld.sshfl [vmem:[#allocation1 + $0x18] sm:$0xff pattern:$0x75316420]
    %v411 = vld.sshfl [vmem:[#allocation1 + $0x20] sm:$0xff pattern:$0x75316420]
    %v412 = vld.sshfl [vmem:[#allocation1 + $0x28] sm:$0xff pattern:$0x75316420]
    %v413 = vld.sshfl [vmem:[#allocation1 + $0x30] sm:$0xff pattern:$0x75316420]
    %414 = vrot.lane.b32.xlu0 %v407, 91
    %v415 = vpop.permute.xlu0 %414
    %416 = vrot.lane.b32.xlu0 %v408, 91
    %v417 = vpop.permute.xlu0 %416
    %418 = vrot.lane.b32.xlu0 %v409, 91
    %v419 = vpop.permute.xlu0 %418
    %420 = vrot.lane.b32.xlu0 %v410, 91
    %v421 = vpop.permute.xlu0 %420
    %422 = vrot.lane.b32.xlu0 %v411, 91
    %v423 = vpop.permute.xlu0 %422
    %424 = vrot.lane.b32.xlu0 %v412, 91
    %v425 = vpop.permute.xlu0 %424
    %426 = vrot.lane.b32.xlu0 %v413, 91
    %v427 = vpop.permute.xlu0 %426
    %vm428 = vcmask 744448
    %v429 = vsel %vm428, %v415, %v417
    %v430 = vsel %vm428, %v417, %v419
    %v431 = vsel %vm428, %v419, %v421
    %v432 = vsel %vm428, %v421, %v423
    %v433 = vsel %vm428, %v423, %v425
    %v434 = vsel %vm428, %v425, %v427
    %441 = vst [vmem:[#allocation2 + $0x90] sm:$0xf0] %v429
    %442 = vst [vmem:[#allocation2 + $0x98] sm:$0xf0] %v430
    %443 = vst [vmem:[#allocation2 + $0xa0] sm:$0xf0] %v431
    %444 = vst [vmem:[#allocation2 + $0xa8] sm:$0xf0] %v432
    %445 = vst [vmem:[#allocation2 + $0xb0] sm:$0xf0] %v433
    %446 = vst [vmem:[#allocation2 + $0xb8] sm:$0xf0] %v434
    %v447 = vld [vmem:[#allocation3] sm:$0xff]
    %v448 = vld [vmem:[#allocation3 + $0x8] sm:$0xff]
    %v449 = vld [vmem:[#allocation3 + $0x10] sm:$0xff]
    %v450 = vld [vmem:[#allocation3 + $0x18] sm:$0xf]
    %455 = vst [vmem:[#allocation1] ss:$2 sm:$0xff] %v447
    %s456 = scalar_lea.vmem [#allocation1], 16
    %457 = vst [vmem:[%s456] ss:$2 sm:$0xff] %v448
    %s458 = scalar_lea.vmem [#allocation1], 32
    %459 = vst [vmem:[%s458] ss:$2 sm:$0xff] %v449
    %s460 = scalar_lea.vmem [#allocation1], 48
    %461 = vst [vmem:[%s460] ss:$2 sm:$0xff] %v450
    %v462 = vld.sshfl [vmem:[#allocation1] sm:$0xff pattern:$0x75316420]
    %v463 = vld.sshfl [vmem:[#allocation1 + $0x8] sm:$0xff pattern:$0x75316420]
    %v464 = vld.sshfl [vmem:[#allocation1 + $0x10] sm:$0xff pattern:$0x75316420]
    %v465 = vld.sshfl [vmem:[#allocation1 + $0x18] sm:$0xff pattern:$0x75316420]
    %v466 = vld.sshfl [vmem:[#allocation1 + $0x20] sm:$0xff pattern:$0x75316420]
    %v467 = vld.sshfl [vmem:[#allocation1 + $0x28] sm:$0xff pattern:$0x75316420]
    %v468 = vld.sshfl [vmem:[#allocation1 + $0x30] sm:$0xff pattern:$0x75316420]
    %469 = vrot.lane.b32.xlu0 %v462, 90
    %v470 = vpop.permute.xlu0 %469
    %471 = vrot.lane.b32.xlu0 %v463, 90
    %v472 = vpop.permute.xlu0 %471
    %473 = vrot.lane.b32.xlu0 %v464, 90
    %v474 = vpop.permute.xlu0 %473
    %475 = vrot.lane.b32.xlu0 %v465, 90
    %v476 = vpop.permute.xlu0 %475
    %477 = vrot.lane.b32.xlu0 %v466, 90
    %v478 = vpop.permute.xlu0 %477
    %479 = vrot.lane.b32.xlu0 %v467, 90
    %v480 = vpop.permute.xlu0 %479
    %481 = vrot.lane.b32.xlu0 %v468, 90
    %v482 = vpop.permute.xlu0 %481
    %vm483 = vcmask 736256
    %v484 = vsel %vm483, %v470, %v472
    %v485 = vsel %vm483, %v472, %v474
    %v486 = vsel %vm483, %v474, %v476
    %v487 = vsel %vm483, %v476, %v478
    %v488 = vsel %vm483, %v478, %v480
    %v489 = vsel %vm483, %v480, %v482
    %496 = vst [vmem:[#allocation2 + $0xc0] sm:$0xf] %v484
    %497 = vst [vmem:[#allocation2 + $0xc8] sm:$0xf] %v485
    %498 = vst [vmem:[#allocation2 + $0xd0] sm:$0xf] %v486
    %499 = vst [vmem:[#allocation2 + $0xd8] sm:$0xf] %v487
    %500 = vst [vmem:[#allocation2 + $0xe0] sm:$0xf] %v488
    %501 = vst [vmem:[#allocation2 + $0xe8] sm:$0xf] %v489
    %v502 = vld [vmem:[%s1] sm:$0xff]
    %v503 = vld [vmem:[%s1 + $0x8] sm:$0xff]
    %v504 = vld [vmem:[%s1 + $0x10] sm:$0xff]
    %v505 = vld [vmem:[%s1 + $0x18] sm:$0xff]
    %v506 = vld [vmem:[#allocation2] sm:$0xff]
    %v507 = vld [vmem:[#allocation2 + $0x8] sm:$0xff]
    %v508 = vld [vmem:[#allocation2 + $0x10] sm:$0xff]
    %v509 = vld [vmem:[#allocation2 + $0x18] sm:$0xff]
    %v510 = vld [vmem:[#allocation2 + $0x20] sm:$0xff]
    %v511 = vld [vmem:[#allocation2 + $0x28] sm:$0xff]
    %v512 = vld [vmem:[#allocation2 + $0x30] sm:$0xff]
    %v513 = vld [vmem:[#allocation2 + $0x38] sm:$0xff]
    %v514 = vld [vmem:[#allocation2 + $0x40] sm:$0xff]
    %v515 = vld [vmem:[#allocation2 + $0x48] sm:$0xff]
    %v516 = vld [vmem:[#allocation2 + $0x50] sm:$0xff]
    %v517 = vld [vmem:[#allocation2 + $0x58] sm:$0xff]
    %v518 = vld [vmem:[#allocation2 + $0x60] sm:$0xff]
    %v519 = vld [vmem:[#allocation2 + $0x68] sm:$0xff]
    %v520 = vld [vmem:[#allocation2 + $0x70] sm:$0xff]
    %v521 = vld [vmem:[#allocation2 + $0x78] sm:$0xff]
    %v522 = vld [vmem:[#allocation2 + $0x80] sm:$0xff]
    %v523 = vld [vmem:[#allocation2 + $0x88] sm:$0xff]
    %v524 = vld [vmem:[#allocation2 + $0x90] sm:$0xff]
    %v525 = vld [vmem:[#allocation2 + $0x98] sm:$0xff]
    %v526 = vld [vmem:[#allocation2 + $0xa0] sm:$0xff]
    %v527 = vld [vmem:[#allocation2 + $0xa8] sm:$0xff]
    %v528 = vld [vmem:[#allocation2 + $0xb0] sm:$0xff]
    %v529 = vld [vmem:[#allocation2 + $0xb8] sm:$0xff]
    %v530 = vld [vmem:[#allocation2 + $0xc0] sm:$0xf]
    %v531 = vld [vmem:[#allocation2 + $0xc8] sm:$0xf]
    %v532 = vld [vmem:[#allocation2 + $0xd0] sm:$0xf]
    %v533 = vld [vmem:[#allocation2 + $0xd8] sm:$0xf]
    %v534 = vld [vmem:[#allocation2 + $0xe0] sm:$0xf]
    %v535 = vld [vmem:[#allocation2 + $0xe8] sm:$0xf]
    %v536 = vld [vmem:[%s2] sm:$0xff]
    %v537 = vld [vmem:[%s2 + $0x8] sm:$0xff]
    %v538 = vld [vmem:[%s2 + $0x10] sm:$0xff]
    %v539 = vld [vmem:[%s2 + $0x18] sm:$0xff]
    %541 = vset.pattern.permute.xlu0 0
    %542 = vperm.xlu0 %541, %v536
    %v543 = vpop.permute.xlu0 %542
    %546 = vset.pattern.permute.xlu0 0
    %547 = vperm.xlu0 %546, %v537
    %v548 = vpop.permute.xlu0 %547
    %551 = vset.pattern.permute.xlu0 0
    %552 = vperm.xlu0 %551, %v538
    %v553 = vpop.permute.xlu0 %552
    %556 = vset.pattern.permute.xlu0 0
    %557 = vperm.xlu0 %556, %v539
    %v558 = vpop.permute.xlu0 %557
    %vm560 = vcmask 293888
    %v562 = vsel %vm560, %v502, 0
    %v565 = vsel %vm560, %v503, 0
    %v568 = vsel %vm560, %v504, 0
    %v571 = vsel %vm560, %v505, 0
    %vm573 = vcmask 1043456
    %v575 = vsel %vm573, %v530, 0
    %v578 = vsel %vm573, %v531, 0
    %v581 = vsel %vm573, %v532, 0
    %v584 = vsel %vm573, %v533, 0
    %v587 = vsel %vm573, %v534, 0
    %v590 = vsel %vm573, %v535, 0
    %592 = vmatpush.msra.mxu0 0.0
    %593 = vmatpush.msra.mxu0 0.0
    %594 = vmatpush.msra.mxu0 0.0
    %595 = vmatpush.msra.mxu0 0.0
    %596 = vmatpush.msra.mxu0 0.0
    %597 = vmatpush.msra.mxu0 0.0
    %598 = vmatpush.msra.mxu0 0.0
    %599 = vmatpush.msra.mxu0 0.0
    %600 = vmatpush.msra.mxu0 0.0
    %601 = vmatpush.msra.mxu0 0.0
    %602 = vmatpush.msra.mxu0 0.0
    %603 = vmatpush.msra.mxu0 %v575
    %604 = vmatpush.msra.mxu0 %v524
    %605 = vmatpush.msra.mxu0 %v518
    %606 = vmatpush.msra.mxu0 %v512
    %607 = vmatpush.msra.mxu0 %v506
    %608 = vmatmul.f32.gmra.mxu0 %v562
    %v609 = vpop.f32.mrf.mxu0
    %v610 = vadd.f32 %v543, %v609
    %611 = vmatmul.f32.gmra.mxu0 %v565
    %v612 = vpop.f32.mrf.mxu0
    %v613 = vadd.f32 %v548, %v612
    %614 = vmatmul.f32.gmra.mxu0 %v568
    %v615 = vpop.f32.mrf.mxu0
    %v616 = vadd.f32 %v553, %v615
    %617 = vmatmul.f32.gmra.mxu0 %v571
    %v618 = vpop.f32.mrf.mxu0
    %v619 = vadd.f32 %v558, %v618
    %620 = vdwg.mxu0
    %621 = vmatpush.msra.mxu0 0.0
    %622 = vmatpush.msra.mxu0 0.0
    %623 = vmatpush.msra.mxu0 0.0
    %624 = vmatpush.msra.mxu0 0.0
    %625 = vmatpush.msra.mxu0 0.0
    %626 = vmatpush.msra.mxu0 0.0
    %627 = vmatpush.msra.mxu0 0.0
    %628 = vmatpush.msra.mxu0 0.0
    %629 = vmatpush.msra.mxu0 0.0
    %630 = vmatpush.msra.mxu0 0.0
    %631 = vmatpush.msra.mxu0 0.0
    %632 = vmatpush.msra.mxu0 %v578
    %633 = vmatpush.msra.mxu0 %v525
    %634 = vmatpush.msra.mxu0 %v519
    %635 = vmatpush.msra.mxu0 %v513
    %636 = vmatpush.msra.mxu0 %v507
    %637 = vmatmul.f32.gmra.mxu0 %v562
    %v638 = vpop.f32.mrf.mxu0
    %v639 = vadd.f32 %v543, %v638
    %640 = vmatmul.f32.gmra.mxu0 %v565
    %v641 = vpop.f32.mrf.mxu0
    %v642 = vadd.f32 %v548, %v641
    %643 = vmatmul.f32.gmra.mxu0 %v568
    %v644 = vpop.f32.mrf.mxu0
    %v645 = vadd.f32 %v553, %v644
    %646 = vmatmul.f32.gmra.mxu0 %v571
    %v647 = vpop.f32.mrf.mxu0
    %v648 = vadd.f32 %v558, %v647
    %649 = vdwg.mxu0
    %650 = vmatpush.msra.mxu0 0.0
    %651 = vmatpush.msra.mxu0 0.0
    %652 = vmatpush.msra.mxu0 0.0
    %653 = vmatpush.msra.mxu0 0.0
    %654 = vmatpush.msra.mxu0 0.0
    %655 = vmatpush.msra.mxu0 0.0
    %656 = vmatpush.msra.mxu0 0.0
    %657 = vmatpush.msra.mxu0 0.0
    %658 = vmatpush.msra.mxu0 0.0
    %659 = vmatpush.msra.mxu0 0.0
    %660 = vmatpush.msra.mxu0 0.0
    %661 = vmatpush.msra.mxu0 %v581
    %662 = vmatpush.msra.mxu0 %v526
    %663 = vmatpush.msra.mxu0 %v520
    %664 = vmatpush.msra.mxu0 %v514
    %665 = vmatpush.msra.mxu0 %v508
    %666 = vmatmul.f32.gmra.mxu0 %v562
    %v667 = vpop.f32.mrf.mxu0
    %v668 = vadd.f32 %v543, %v667
    %669 = vmatmul.f32.gmra.mxu0 %v565
    %v670 = vpop.f32.mrf.mxu0
    %v671 = vadd.f32 %v548, %v670
    %672 = vmatmul.f32.gmra.mxu0 %v568
    %v673 = vpop.f32.mrf.mxu0
    %v674 = vadd.f32 %v553, %v673
    %675 = vmatmul.f32.gmra.mxu0 %v571
    %v676 = vpop.f32.mrf.mxu0
    %v677 = vadd.f32 %v558, %v676
    %678 = vdwg.mxu0
    %679 = vmatpush.msra.mxu0 0.0
    %680 = vmatpush.msra.mxu0 0.0
    %681 = vmatpush.msra.mxu0 0.0
    %682 = vmatpush.msra.mxu0 0.0
    %683 = vmatpush.msra.mxu0 0.0
    %684 = vmatpush.msra.mxu0 0.0
    %685 = vmatpush.msra.mxu0 0.0
    %686 = vmatpush.msra.mxu0 0.0
    %687 = vmatpush.msra.mxu0 0.0
    %688 = vmatpush.msra.mxu0 0.0
    %689 = vmatpush.msra.mxu0 0.0
    %690 = vmatpush.msra.mxu0 %v584
    %691 = vmatpush.msra.mxu0 %v527
    %692 = vmatpush.msra.mxu0 %v521
    %693 = vmatpush.msra.mxu0 %v515
    %694 = vmatpush.msra.mxu0 %v509
    %695 = vmatmul.f32.gmra.mxu0 %v562
    %v696 = vpop.f32.mrf.mxu0
    %v697 = vadd.f32 %v543, %v696
    %698 = vmatmul.f32.gmra.mxu0 %v565
    %v699 = vpop.f32.mrf.mxu0
    %v700 = vadd.f32 %v548, %v699
    %701 = vmatmul.f32.gmra.mxu0 %v568
    %v702 = vpop.f32.mrf.mxu0
    %v703 = vadd.f32 %v553, %v702
    %704 = vmatmul.f32.gmra.mxu0 %v571
    %v705 = vpop.f32.mrf.mxu0
    %v706 = vadd.f32 %v558, %v705
    %707 = vdwg.mxu0
    %708 = vmatpush.msra.mxu0 0.0
    %709 = vmatpush.msra.mxu0 0.0
    %710 = vmatpush.msra.mxu0 0.0
    %711 = vmatpush.msra.mxu0 0.0
    %712 = vmatpush.msra.mxu0 0.0
    %713 = vmatpush.msra.mxu0 0.0
    %714 = vmatpush.msra.mxu0 0.0
    %715 = vmatpush.msra.mxu0 0.0
    %716 = vmatpush.msra.mxu0 0.0
    %717 = vmatpush.msra.mxu0 0.0
    %718 = vmatpush.msra.mxu0 0.0
    %719 = vmatpush.msra.mxu0 %v587
    %720 = vmatpush.msra.mxu0 %v528
    %721 = vmatpush.msra.mxu0 %v522
    %722 = vmatpush.msra.mxu0 %v516
    %723 = vmatpush.msra.mxu0 %v510
    %724 = vmatmul.f32.gmra.mxu0 %v562
    %v725 = vpop.f32.mrf.mxu0
    %v726 = vadd.f32 %v543, %v725
    %727 = vmatmul.f32.gmra.mxu0 %v565
    %v728 = vpop.f32.mrf.mxu0
    %v729 = vadd.f32 %v548, %v728
    %730 = vmatmul.f32.gmra.mxu0 %v568
    %v731 = vpop.f32.mrf.mxu0
    %v732 = vadd.f32 %v553, %v731
    %733 = vmatmul.f32.gmra.mxu0 %v571
    %v734 = vpop.f32.mrf.mxu0
    %v735 = vadd.f32 %v558, %v734
    %736 = vdwg.mxu0
    %737 = vmatpush.msra.mxu0 0.0
    %738 = vmatpush.msra.mxu0 0.0
    %739 = vmatpush.msra.mxu0 0.0
    %740 = vmatpush.msra.mxu0 0.0
    %741 = vmatpush.msra.mxu0 0.0
    %742 = vmatpush.msra.mxu0 0.0
    %743 = vmatpush.msra.mxu0 0.0
    %744 = vmatpush.msra.mxu0 0.0
    %745 = vmatpush.msra.mxu0 0.0
    %746 = vmatpush.msra.mxu0 0.0
    %747 = vmatpush.msra.mxu0 0.0
    %748 = vmatpush.msra.mxu0 %v590
    %749 = vmatpush.msra.mxu0 %v529
    %750 = vmatpush.msra.mxu0 %v523
    %751 = vmatpush.msra.mxu0 %v517
    %752 = vmatpush.msra.mxu0 %v511
    %753 = vmatmul.f32.gmra.mxu0 %v562
    %v754 = vpop.f32.mrf.mxu0
    %v755 = vadd.f32 %v543, %v754
    %756 = vmatmul.f32.gmra.mxu0 %v565
    %v757 = vpop.f32.mrf.mxu0
    %v758 = vadd.f32 %v548, %v757
    %759 = vmatmul.f32.gmra.mxu0 %v568
    %v760 = vpop.f32.mrf.mxu0
    %v761 = vadd.f32 %v553, %v760
    %762 = vmatmul.f32.gmra.mxu0 %v571
    %v763 = vpop.f32.mrf.mxu0
    %v764 = vadd.f32 %v558, %v763
    %765 = vdwg.mxu0
    %vm766 = vcmp.gt.f32.partialorder %v610, 0.0
    %vm767 = vcmp.gt.f32.partialorder %v639, 0.0
    %vm768 = vcmp.gt.f32.partialorder %v668, 0.0
    %vm769 = vcmp.gt.f32.partialorder %v697, 0.0
    %vm770 = vcmp.gt.f32.partialorder %v726, 0.0
    %vm771 = vcmp.gt.f32.partialorder %v755, 0.0
    %vm772 = vcmp.gt.f32.partialorder %v613, 0.0
    %vm773 = vcmp.gt.f32.partialorder %v642, 0.0
    %vm774 = vcmp.gt.f32.partialorder %v671, 0.0
    %vm775 = vcmp.gt.f32.partialorder %v700, 0.0
    %vm776 = vcmp.gt.f32.partialorder %v729, 0.0
    %vm777 = vcmp.gt.f32.partialorder %v758, 0.0
    %v778 = vmin.f32 %v610, 0.0
    %v779 = vmin.f32 %v639, 0.0
    %v780 = vmin.f32 %v668, 0.0
    %v781 = vmin.f32 %v697, 0.0
    %v782 = vmin.f32 %v726, 0.0
    %v783 = vmin.f32 %v755, 0.0
    %v784 = vmin.f32 %v613, 0.0
    %v785 = vmin.f32 %v642, 0.0
    %v786 = vmin.f32 %v671, 0.0
    %v787 = vmin.f32 %v700, 0.0
    %v788 = vmin.f32 %v729, 0.0
    %v789 = vmin.f32 %v758, 0.0
    %v790 = vmul.f32 %v778, 1.442695
    %v791 = vpow.pop %v790
    %v792 = vmul.f32 %v779, 1.442695
    %v793 = vpow.pop %v792
    %v794 = vmul.f32 %v780, 1.442695
    %v795 = vpow.pop %v794
    %v796 = vmul.f32 %v781, 1.442695
    %v797 = vpow.pop %v796
    %v798 = vmul.f32 %v782, 1.442695
    %v799 = vpow.pop %v798
    %v800 = vmul.f32 %v783, 1.442695
    %v801 = vpow.pop %v800
    %v802 = vmul.f32 %v784, 1.442695
    %v803 = vpow.pop %v802
    %v804 = vmul.f32 %v785, 1.442695
    %v805 = vpow.pop %v804
    %v806 = vmul.f32 %v786, 1.442695
    %v807 = vpow.pop %v806
    %v808 = vmul.f32 %v787, 1.442695
    %v809 = vpow.pop %v808
    %v810 = vmul.f32 %v788, 1.442695
    %v811 = vpow.pop %v810
    %v812 = vmul.f32 %v789, 1.442695
    %v813 = vpow.pop %v812
    %v814 = vsub.f32 %v791, 1.0
    %v815 = vsub.f32 %v793, 1.0
    %v816 = vsub.f32 %v795, 1.0
    %v817 = vsub.f32 %v797, 1.0
    %v818 = vsub.f32 %v799, 1.0
    %v819 = vsub.f32 %v801, 1.0
    %v820 = vsub.f32 %v803, 1.0
    %v821 = vsub.f32 %v805, 1.0
    %v822 = vsub.f32 %v807, 1.0
    %v823 = vsub.f32 %v809, 1.0
    %v824 = vsub.f32 %v811, 1.0
    %v825 = vsub.f32 %v813, 1.0
    %v826 = vsel %vm766, %v610, %v814
    %v827 = vsel %vm767, %v639, %v815
    %v828 = vsel %vm768, %v668, %v816
    %v829 = vsel %vm769, %v697, %v817
    %v830 = vsel %vm770, %v726, %v818
    %v831 = vsel %vm771, %v755, %v819
    %v832 = vsel %vm772, %v613, %v820
    %v833 = vsel %vm773, %v642, %v821
    %v834 = vsel %vm774, %v671, %v822
    %v835 = vsel %vm775, %v700, %v823
    %v836 = vsel %vm776, %v729, %v824
    %v837 = vsel %vm777, %v758, %v825
    %v838 = vsub.f32 0.0, %v616
    %v839 = vsub.f32 0.0, %v645
    %v840 = vsub.f32 0.0, %v674
    %v841 = vsub.f32 0.0, %v703
    %v842 = vsub.f32 0.0, %v732
    %v843 = vsub.f32 0.0, %v761
    %v844 = vsub.f32 0.0, %v619
    %v845 = vsub.f32 0.0, %v648
    %v846 = vsub.f32 0.0, %v677
    %v847 = vsub.f32 0.0, %v706
    %v848 = vsub.f32 0.0, %v735
    %v849 = vsub.f32 0.0, %v764
    %v850 = vmul.f32 %v838, 1.442695
    %v851 = vpow.pop %v850
    %v852 = vmul.f32 %v839, 1.442695
    %v853 = vpow.pop %v852
    %v854 = vmul.f32 %v840, 1.442695
    %v855 = vpow.pop %v854
    %v856 = vmul.f32 %v841, 1.442695
    %v857 = vpow.pop %v856
    %v858 = vmul.f32 %v842, 1.442695
    %v859 = vpow.pop %v858
    %v860 = vmul.f32 %v843, 1.442695
    %v861 = vpow.pop %v860
    %v862 = vmul.f32 %v844, 1.442695
    %v863 = vpow.pop %v862
    %v864 = vmul.f32 %v845, 1.442695
    %v865 = vpow.pop %v864
    %v866 = vmul.f32 %v846, 1.442695
    %v867 = vpow.pop %v866
    %v868 = vmul.f32 %v847, 1.442695
    %v869 = vpow.pop %v868
    %v870 = vmul.f32 %v848, 1.442695
    %v871 = vpow.pop %v870
    %v872 = vmul.f32 %v849, 1.442695
    %v873 = vpow.pop %v872
    %v874 = vadd.f32 %v851, 1.0
    %v875 = vadd.f32 %v853, 1.0
    %v876 = vadd.f32 %v855, 1.0
    %v877 = vadd.f32 %v857, 1.0
    %v878 = vadd.f32 %v859, 1.0
    %v879 = vadd.f32 %v861, 1.0
    %v880 = vadd.f32 %v863, 1.0
    %v881 = vadd.f32 %v865, 1.0
    %v882 = vadd.f32 %v867, 1.0
    %v883 = vadd.f32 %v869, 1.0
    %v884 = vadd.f32 %v871, 1.0
    %v885 = vadd.f32 %v873, 1.0
    %v886 = vrcp.pop %v874
    %v887 = vmul.f32 %v874, %v886
    %v888 = vsub.f32 1.0, %v887
    %v889 = vmul.f32 %v886, %v888
    %v890 = vadd.f32 %v886, %v889
    %vm891 = vweird.f32 %v874
    %vm892 = vweird.f32 %v886
    %vm893 = vmor %vm891, %vm892
    %v894 = vsel %vm893, %v886, %v890
    %v895 = vand.u32 2147483647, %v874
    %vm896 = vcmp.eq.f32.partialorder %v895, 8.507059e+37
    %v897 = vand.u32 %v874, 2147483648
    %v898 = vor.u32 1.1754944e-38, %v897
    %v899 = vsel %vm896, %v898, %v894
    %v900 = vmul.f32 1.0, %v899
    %v901 = vrcp.pop %v875
    %v902 = vmul.f32 %v875, %v901
    %v903 = vsub.f32 1.0, %v902
    %v904 = vmul.f32 %v901, %v903
    %v905 = vadd.f32 %v901, %v904
    %vm906 = vweird.f32 %v875
    %vm907 = vweird.f32 %v901
    %vm908 = vmor %vm906, %vm907
    %v909 = vsel %vm908, %v901, %v905
    %v910 = vand.u32 2147483647, %v875
    %vm911 = vcmp.eq.f32.partialorder %v910, 8.507059e+37
    %v912 = vand.u32 %v875, 2147483648
    %v913 = vor.u32 1.1754944e-38, %v912
    %v914 = vsel %vm911, %v913, %v909
    %v915 = vmul.f32 1.0, %v914
    %v916 = vrcp.pop %v876
    %v917 = vmul.f32 %v876, %v916
    %v918 = vsub.f32 1.0, %v917
    %v919 = vmul.f32 %v916, %v918
    %v920 = vadd.f32 %v916, %v919
    %vm921 = vweird.f32 %v876
    %vm922 = vweird.f32 %v916
    %vm923 = vmor %vm921, %vm922
    %v924 = vsel %vm923, %v916, %v920
    %v925 = vand.u32 2147483647, %v876
    %vm926 = vcmp.eq.f32.partialorder %v925, 8.507059e+37
    %v927 = vand.u32 %v876, 2147483648
    %v928 = vor.u32 1.1754944e-38, %v927
    %v929 = vsel %vm926, %v928, %v924
    %v930 = vmul.f32 1.0, %v929
    %v931 = vrcp.pop %v877
    %v932 = vmul.f32 %v877, %v931
    %v933 = vsub.f32 1.0, %v932
    %v934 = vmul.f32 %v931, %v933
    %v935 = vadd.f32 %v931, %v934
    %vm936 = vweird.f32 %v877
    %vm937 = vweird.f32 %v931
    %vm938 = vmor %vm936, %vm937
    %v939 = vsel %vm938, %v931, %v935
    %v940 = vand.u32 2147483647, %v877
    %vm941 = vcmp.eq.f32.partialorder %v940, 8.507059e+37
    %v942 = vand.u32 %v877, 2147483648
    %v943 = vor.u32 1.1754944e-38, %v942
    %v944 = vsel %vm941, %v943, %v939
    %v945 = vmul.f32 1.0, %v944
    %v946 = vrcp.pop %v878
    %v947 = vmul.f32 %v878, %v946
    %v948 = vsub.f32 1.0, %v947
    %v949 = vmul.f32 %v946, %v948
    %v950 = vadd.f32 %v946, %v949
    %vm951 = vweird.f32 %v878
    %vm952 = vweird.f32 %v946
    %vm953 = vmor %vm951, %vm952
    %v954 = vsel %vm953, %v946, %v950
    %v955 = vand.u32 2147483647, %v878
    %vm956 = vcmp.eq.f32.partialorder %v955, 8.507059e+37
    %v957 = vand.u32 %v878, 2147483648
    %v958 = vor.u32 1.1754944e-38, %v957
    %v959 = vsel %vm956, %v958, %v954
    %v960 = vmul.f32 1.0, %v959
    %v961 = vrcp.pop %v879
    %v962 = vmul.f32 %v879, %v961
    %v963 = vsub.f32 1.0, %v962
    %v964 = vmul.f32 %v961, %v963
    %v965 = vadd.f32 %v961, %v964
    %vm966 = vweird.f32 %v879
    %vm967 = vweird.f32 %v961
    %vm968 = vmor %vm966, %vm967
    %v969 = vsel %vm968, %v961, %v965
    %v970 = vand.u32 2147483647, %v879
    %vm971 = vcmp.eq.f32.partialorder %v970, 8.507059e+37
    %v972 = vand.u32 %v879, 2147483648
    %v973 = vor.u32 1.1754944e-38, %v972
    %v974 = vsel %vm971, %v973, %v969
    %v975 = vmul.f32 1.0, %v974
    %v976 = vrcp.pop %v880
    %v977 = vmul.f32 %v880, %v976
    %v978 = vsub.f32 1.0, %v977
    %v979 = vmul.f32 %v976, %v978
    %v980 = vadd.f32 %v976, %v979
    %vm981 = vweird.f32 %v880
    %vm982 = vweird.f32 %v976
    %vm983 = vmor %vm981, %vm982
    %v984 = vsel %vm983, %v976, %v980
    %v985 = vand.u32 2147483647, %v880
    %vm986 = vcmp.eq.f32.partialorder %v985, 8.507059e+37
    %v987 = vand.u32 %v880, 2147483648
    %v988 = vor.u32 1.1754944e-38, %v987
    %v989 = vsel %vm986, %v988, %v984
    %v990 = vmul.f32 1.0, %v989
    %v991 = vrcp.pop %v881
    %v992 = vmul.f32 %v881, %v991
    %v993 = vsub.f32 1.0, %v992
    %v994 = vmul.f32 %v991, %v993
    %v995 = vadd.f32 %v991, %v994
    %vm996 = vweird.f32 %v881
    %vm997 = vweird.f32 %v991
    %vm998 = vmor %vm996, %vm997
    %v999 = vsel %vm998, %v991, %v995
    %v1000 = vand.u32 2147483647, %v881
    %vm1001 = vcmp.eq.f32.partialorder %v1000, 8.507059e+37
    %v1002 = vand.u32 %v881, 2147483648
    %v1003 = vor.u32 1.1754944e-38, %v1002
    %v1004 = vsel %vm1001, %v1003, %v999
    %v1005 = vmul.f32 1.0, %v1004
    %v1006 = vrcp.pop %v882
    %v1007 = vmul.f32 %v882, %v1006
    %v1008 = vsub.f32 1.0, %v1007
    %v1009 = vmul.f32 %v1006, %v1008
    %v1010 = vadd.f32 %v1006, %v1009
    %vm1011 = vweird.f32 %v882
    %vm1012 = vweird.f32 %v1006
    %vm1013 = vmor %vm1011, %vm1012
    %v1014 = vsel %vm1013, %v1006, %v1010
    %v1015 = vand.u32 2147483647, %v882
    %vm1016 = vcmp.eq.f32.partialorder %v1015, 8.507059e+37
    %v1017 = vand.u32 %v882, 2147483648
    %v1018 = vor.u32 1.1754944e-38, %v1017
    %v1019 = vsel %vm1016, %v1018, %v1014
    %v1020 = vmul.f32 1.0, %v1019
    %v1021 = vrcp.pop %v883
    %v1022 = vmul.f32 %v883, %v1021
    %v1023 = vsub.f32 1.0, %v1022
    %v1024 = vmul.f32 %v1021, %v1023
    %v1025 = vadd.f32 %v1021, %v1024
    %vm1026 = vweird.f32 %v883
    %vm1027 = vweird.f32 %v1021
    %vm1028 = vmor %vm1026, %vm1027
    %v1029 = vsel %vm1028, %v1021, %v1025
    %v1030 = vand.u32 2147483647, %v883
    %vm1031 = vcmp.eq.f32.partialorder %v1030, 8.507059e+37
    %v1032 = vand.u32 %v883, 2147483648
    %v1033 = vor.u32 1.1754944e-38, %v1032
    %v1034 = vsel %vm1031, %v1033, %v1029
    %v1035 = vmul.f32 1.0, %v1034
    %v1036 = vrcp.pop %v884
    %v1037 = vmul.f32 %v884, %v1036
    %v1038 = vsub.f32 1.0, %v1037
    %v1039 = vmul.f32 %v1036, %v1038
    %v1040 = vadd.f32 %v1036, %v1039
    %vm1041 = vweird.f32 %v884
    %vm1042 = vweird.f32 %v1036
    %vm1043 = vmor %vm1041, %vm1042
    %v1044 = vsel %vm1043, %v1036, %v1040
    %v1045 = vand.u32 2147483647, %v884
    %vm1046 = vcmp.eq.f32.partialorder %v1045, 8.507059e+37
    %v1047 = vand.u32 %v884, 2147483648
    %v1048 = vor.u32 1.1754944e-38, %v1047
    %v1049 = vsel %vm1046, %v1048, %v1044
    %v1050 = vmul.f32 1.0, %v1049
    %v1051 = vrcp.pop %v885
    %v1052 = vmul.f32 %v885, %v1051
    %v1053 = vsub.f32 1.0, %v1052
    %v1054 = vmul.f32 %v1051, %v1053
    %v1055 = vadd.f32 %v1051, %v1054
    %vm1056 = vweird.f32 %v885
    %vm1057 = vweird.f32 %v1051
    %vm1058 = vmor %vm1056, %vm1057
    %v1059 = vsel %vm1058, %v1051, %v1055
    %v1060 = vand.u32 2147483647, %v885
    %vm1061 = vcmp.eq.f32.partialorder %v1060, 8.507059e+37
    %v1062 = vand.u32 %v885, 2147483648
    %v1063 = vor.u32 1.1754944e-38, %v1062
    %v1064 = vsel %vm1061, %v1063, %v1059
    %v1065 = vmul.f32 1.0, %v1064
    %v1066 = vmul.f32 %v826, %v900
    %v1067 = vmul.f32 %v827, %v915
    %v1068 = vmul.f32 %v828, %v930
    %v1069 = vmul.f32 %v829, %v945
    %v1070 = vmul.f32 %v830, %v960
    %v1071 = vmul.f32 %v831, %v975
    %v1072 = vmul.f32 %v832, %v990
    %v1073 = vmul.f32 %v833, %v1005
    %v1074 = vmul.f32 %v834, %v1020
    %v1075 = vmul.f32 %v835, %v1035
    %v1076 = vmul.f32 %v836, %v1050
    %v1077 = vmul.f32 %v837, %v1065
    %1078 = vst [vmem:[#allocation6] sm:$0xff] %v1066
    %1079 = vst [vmem:[#allocation6 + $0x8] sm:$0xff] %v1067
    %1080 = vst [vmem:[#allocation6 + $0x10] sm:$0xff] %v1068
    %1081 = vst [vmem:[#allocation6 + $0x18] sm:$0xff] %v1069
    %1082 = vst [vmem:[#allocation6 + $0x20] sm:$0xff] %v1070
    %1083 = vst [vmem:[#allocation6 + $0x28] sm:$0xff] %v1071
    %1084 = vst [vmem:[#allocation6 + $0x30] sm:$0xff] %v1072
    %1085 = vst [vmem:[#allocation6 + $0x38] sm:$0xff] %v1073
    %1086 = vst [vmem:[#allocation6 + $0x40] sm:$0xff] %v1074
    %1087 = vst [vmem:[#allocation6 + $0x48] sm:$0xff] %v1075
    %1088 = vst [vmem:[#allocation6 + $0x50] sm:$0xff] %v1076
    %1089 = vst [vmem:[#allocation6 + $0x58] sm:$0xff] %v1077
    // Predicated region
    $region18: #{tpu_custom_call.1} parent=1 // pred_check
      _
    $region19: #{tpu_custom_call.1} parent=1 // pred_check_branch
      %1091 = sbr.rel (0) target = $region21
    $region20: #{tpu_custom_call.1} parent=1 // pred_region
      %1093 = vsyncadd [#allocation5], 0
      %s1094 = sshll.u32 [#allocation6], 4
      %s1095 = int_to_ptr.vmem [resolvable:$true] %s1094
      %s1096 = sshll.u32 %s3, 4
      %s1097 = int_to_ptr.hbm [resolvable:$true] %s1096
      %1102 = dma.vmem_to_hbm [thread:$0]  %s1095, 1536, %s1097, [#allocation5], 768, 768, 48
    $region21: #{tpu_custom_call.1} parent=1 // pred_fallthru
      _
    // Predicated region
    $region22: #{tpu_custom_call.1} parent=1 // pred_check
      _
    $region23: #{tpu_custom_call.1} parent=1 // pred_check_branch
      %1104 = sbr.rel (0) target = $region25
    $region24: #{tpu_custom_call.1} parent=1 // pred_region
      %1106 = dma.done [#allocation5], 1536
    $region25: #{tpu_custom_call.1} parent=1 // pred_fallthru
      _
    %1107 = vsyncpa [#allocation4], 1
    %1108 = vsyncpa [#allocation5], 1

</llo_original>
